<compile_context>
chip_gen: v7x
topology: tpu7x:2x2x1
jax: 0.10.0
libtpu: 0.0.40
codegen_flags: <defaults>
</compile_context>

<pallas_src>
import functools

import jax
import jax.numpy as jnp
from jax.experimental import pallas as pl
from jax.experimental.pallas import tpu as pltpu

NEG = 0.01  # LeakyReLU negative slope


def _leaky(v):
    return jnp.where(v >= 0, v, NEG * v)


def _pick_tile(n, pref):
    """Largest tile <= pref that divides n (prefers multiples of 128)."""
    if n <= pref:
        return n
    for t in range(pref, 0, -128):
        if n % t == 0:
            return t
    return n


# --------------------------------------------------------------------------------------
# Kernel 1: tiled pairwise squared distances
#   dist[i, j] = |x_i|^2 + |x_j|^2 - 2 x_i . x_j          (per batch, (i, j) tiles)
# --------------------------------------------------------------------------------------
def dist_kernel(xi_ref, xj_ref, sqj_ref, out_ref):
    xi = xi_ref[0]                                    # (Ti, C) f32
    xj = xj_ref[0]                                    # (Tj, C) f32
    gram = jax.lax.dot_general(xi, xj, (((1,), (1,)), ((), ())),
                               preferred_element_type=jnp.float32)   # (Ti, Tj)
    sqi = jnp.sum(xi * xi, axis=1, keepdims=True)     # (Ti, 1)  column norms (derived in-kernel)
    out_ref[0] = -2.0 * gram + sqi + sqj_ref[0]       # + (1, Tj) row norms


def pairwise_dist(xt, *, tile=512):
    B, N, C = xt.shape
    t = _pick_tile(N, tile)
    sq = jnp.sum(xt * xt, axis=2)[:, None, :]         # (B, 1, N) tiny; avoids in-kernel transpose
    return pl.pallas_call(
        dist_kernel,
        out_shape=jax.ShapeDtypeStruct((B, N, N), jnp.float32),
        grid=(B, N // t, N // t),
        in_specs=[pl.BlockSpec((1, t, C), lambda b, i, j: (b, i, 0)),
                  pl.BlockSpec((1, t, C), lambda b, i, j: (b, j, 0)),
                  pl.BlockSpec((1, 1, t), lambda b, i, j: (b, 0, j))],
        out_specs=pl.BlockSpec((1, t, t), lambda b, i, j: (b, i, j)),
        compiler_params=pltpu.CompilerParams(
            dimension_semantics=("parallel", "parallel", "parallel")),
    )(xt, xt, sq)


# --------------------------------------------------------------------------------------
# Kernel 2: fused edge convolution (per batch, per N-tile)
#   w  = softmax_k( conv_w(diff) )              two folded 1x1 conv+BN + LeakyReLU
#   x  = conv_x([central, diff])                folded 1x1 conv+BN + LeakyReLU
#   out = conv_out(x * w)                       [1, k] conv == one (k*Fout)-deep matmul
# --------------------------------------------------------------------------------------
def edge_conv_kernel(xt_ref, dif_ref,
                     w1_ref, b1_ref, w2_ref, b2_ref,
                     wxc_ref, wxd_ref, bx_ref,
                     woutT_ref, boutT_ref,
                     out_ref, *, TN, K, FOUT):
    f32 = jnp.float32
    bf16 = jnp.bfloat16

    xt = xt_ref[0]                       # (TN, Fin)     bf16  central points of this tile
    dif3 = dif_ref[0]                    # (K, TN, Fin)  bf16  neighbour - central
    dif2 = dif3.reshape(K * TN, dif3.shape[2])   # leading/sublane merge (layout-trivial)

    # ---- conv_w branch (attention logits) ----
    h = jnp.dot(dif2, w1_ref[...], preferred_element_type=f32) + b1_ref[...]
    h = _leaky(h)
    h = jnp.dot(h.astype(bf16), w2_ref[...], preferred_element_type=f32) + b2_ref[...]
    h3 = _leaky(h).reshape(K, TN, FOUT)                                  # (K, TN, FOUT)

    # ---- conv_x branch: central part computed ONCE per point, diff part per edge ----
    xc = jnp.dot(xt, wxc_ref[...], preferred_element_type=f32) + bx_ref[...]   # (TN, FOUT)
    xd = jnp.dot(dif2, wxd_ref[...], preferred_element_type=f32)               # (K*TN, FOUT)
    xx3 = _leaky(xd.reshape(K, TN, FOUT) + xc[None, :, :])                     # (K, TN, FOUT)

    # ---- softmax over the K neighbours (leading axis: index-select is free) ----
    m = h3[0]
    for j in range(1, K):                       # unrolled leading-axis max (pure VPU ops)
        m = jnp.maximum(m, h3[j])
    e3 = jnp.exp(h3 - m[None, :, :])
    den = e3[0]
    for j in range(1, K):                       # unrolled leading-axis sum
        den = den + e3[j]
    w3 = e3 * pl.reciprocal(den, approx=True)[None, :, :]                      # (K, TN, FOUT)

    # ---- conv_out as ONE deep matmul: (FOUT, K*FOUT) @ (K*FOUT, TN) ----
    prod3 = xx3 * w3                                                           # (K, TN, FOUT) f32
    prodT = jnp.transpose(prod3, (0, 2, 1)).reshape(K * FOUT, TN).astype(bf16) # (K*FOUT, TN)
    outT = jnp.dot(woutT_ref[...], prodT, preferred_element_type=f32) + boutT_ref[...]
    out_ref[0] = outT                        # (FOUT, TN): lane-dense store, already transposed


def edge_conv(xt, dif_kmaj, p, *, N, k, Fin, Fout, tile=256):
    B = xt.shape[0]
    Fh = Fout // 2
    tn = _pick_tile(N, tile)
    bf16 = jnp.bfloat16
    f32 = jnp.float32

    row = lambda v: v.reshape(1, -1).astype(f32)
    # conv_out weight (k, Fout_in, Fout_out) -> (Fout_out, k*Fout_in): the kernel's single
    # matmul then directly emits the transposed (Fout, N) output.
    woutT = jnp.transpose(p["wout"], (2, 0, 1)).reshape(Fout, k * Fout).astype(bf16)
    boutT = p["bout"].reshape(-1, 1).astype(f32)

    kern = functools.partial(edge_conv_kernel, TN=tn, K=k, FOUT=Fout)
    wspec = lambda shape: pl.BlockSpec(shape, lambda b, n: (0,) * len(shape))
    return pl.pallas_call(
        kern,
        out_shape=jax.ShapeDtypeStruct((B, Fout, N), f32),
        grid=(B, N // tn),
        in_specs=[
            pl.BlockSpec((1, tn, Fin), lambda b, n: (b, n, 0)),         # central points tile
            pl.BlockSpec((1, k, tn, Fin), lambda b, n: (b, 0, n, 0)),   # edge-diff tile
            wspec((Fin, Fh)), wspec((1, Fh)),
            wspec((Fh, Fout)), wspec((1, Fout)),
            wspec((Fin, Fout)), wspec((Fin, Fout)), wspec((1, Fout)),
            wspec((Fout, k * Fout)), wspec((Fout, 1)),
        ],
        out_specs=pl.BlockSpec((1, Fout, tn), lambda b, n: (b, 0, n)),
        compiler_params=pltpu.CompilerParams(
            dimension_semantics=("parallel", "parallel")),
    )(xt.astype(bf16), dif_kmaj.astype(bf16),
      p["w1"].astype(bf16), row(p["b1"]),
      p["w2"].astype(bf16), row(p["b2"]),
      p["wxc"].astype(bf16), p["wxd"].astype(bf16), row(p["bx"]),
      woutT, boutT)


# --------------------------------------------------------------------------------------
# Full EdgeBlock forward:  [B, Fin, N] -> [B, Fout, N]
# --------------------------------------------------------------------------------------
def edge_block_forward(x, params, k, Fout):
    B, C, N = x.shape
    xt = jnp.transpose(x, (0, 2, 1))                      # (B, N, C)
    dist = pairwise_dist(xt)                              # (B, N, N)   Pallas, tiled
    # kNN: k+1 smallest distances, drop the self match at rank 0 (O(N*k), no full argsort).
    _, idx = jax.lax.top_k(-dist, k + 1)                  # (B, N, k+1)
    idx = idx[:, :, 1:k + 1]                              # (B, N, k)
    # TODO(synk): the neighbour gather + diff still round-trips HBM in plain JAX; fusing it
    # into the edge-conv kernel needs scalar-prefetched idx + an in-kernel DMA gather.
    neigh = jax.vmap(lambda xtb, ib: xtb[ib])(xt, idx)    # (B, N, k, C)
    dif = neigh - xt[:, :, None, :]                       # (B, N, k, C)
    dif_kmaj = jnp.transpose(dif, (0, 2, 1, 3))           # (B, k, N, C)  neighbour-major
    return edge_conv(xt, dif_kmaj, params, N=N, k=k, Fin=C, Fout=Fout)   # (B, Fout, N)


# --------------------------------------------------------------------------------------
# Deterministic synthetic parameters (BN folded into the convs, eval mode)
# --------------------------------------------------------------------------------------
def init_params(key, Fin, Fout, k):
    Fh = Fout // 2
    ks = jax.random.split(key, 11)

    def w(kk, cin, cout, scale=0.2):
        return scale * jax.random.normal(kk, (cin, cout), jnp.float32)

    def b(kk, c, scale=0.05):
        return scale * jax.random.normal(kk, (c,), jnp.float32)

    def bn(kk, c):
        k1, k2, k3, k4 = jax.random.split(kk, 4)
        gamma = 1.0 + 0.1 * jax.random.normal(k1, (c,), jnp.float32)
        beta = 0.1 * jax.random.normal(k2, (c,), jnp.float32)
        mean = 0.1 * jax.random.normal(k3, (c,), jnp.float32)
        var = 0.5 + jax.random.uniform(k4, (c,), jnp.float32)
        return gamma, beta, mean, var

    def fold(W, bias, gamma, beta, mean, var, eps=1e-5):
        s = gamma / jnp.sqrt(var + eps)
        return W * s[None, :], (bias - mean) * s + beta

    # conv_w: Conv(Fin->Fh)+BN+LReLU, Conv(Fh->Fout)+BN+LReLU
    W1, B1 = fold(w(ks[0], Fin, Fh), b(ks[1], Fh), *bn(ks[2], Fh))
    W2, B2 = fold(w(ks[3], Fh, Fout), b(ks[4], Fout), *bn(ks[5], Fout))
    # conv_x: Conv(2Fin->Fout)+BN+LReLU, weight split into central/diff halves
    Wx, Bx = fold(w(ks[6], 2 * Fin, Fout), b(ks[7], Fout), *bn(ks[8], Fout))
    Wxc, Wxd = Wx[:Fin], Wx[Fin:]
    # conv_out: Conv2d(Fout, Fout, [1, k]); stored as (k, Cin=Fout, Cout=Fout)
    Wout = w(ks[9], k * Fout, Fout).reshape(k, Fout, Fout)
    Bout = b(ks[10], Fout)
    return dict(w1=W1, b1=B1, w2=W2, b2=B2, wxc=Wxc, wxd=Wxd, bx=Bx,
                wout=Wout, bout=Bout)


# --------------------------------------------------------------------------------------
# Pure-JAX reference of the same forward (mirrors the kernel's bf16 matmul operands so the
# tolerance can stay tight; structure matches the PyTorch module)
# --------------------------------------------------------------------------------------
def reference_forward(x, p, k, Fout):
    B, C, N = x.shape
    bf16 = jnp.bfloat16
    mm = lambda a, wgt: jnp.matmul(a.astype(bf16), wgt.astype(bf16),
                                   preferred_element_type=jnp.float32)
    xt = jnp.transpose(x, (0, 2, 1))
    sq = jnp.sum(xt * xt, axis=2, keepdims=True)
    dist = (-2.0 * jnp.einsum('bnc,bmc->bnm', xt, xt)
            + sq + jnp.transpose(sq, (0, 2, 1)))
    _, idx = jax.lax.top_k(-dist, k + 1)
    idx = idx[:, :, 1:k + 1]
    neigh = jax.vmap(lambda xtb, ib: xtb[ib])(xt, idx)            # (B,N,k,C)
    cen = jnp.broadcast_to(xt[:, :, None, :], neigh.shape)
    dif = neigh - cen
    h = _leaky(mm(dif, p['w1']) + p['b1'])
    h = _leaky(mm(h, p['w2']) + p['b2'])
    w = jax.nn.softmax(h, axis=2)                                 # softmax over k
    xx = _leaky(mm(cen, p['wxc']) + mm(dif, p['wxd']) + p['bx'])
    prod = (xx * w).astype(bf16)
    out = jnp.einsum('bnkc,kcf->bnf', prod, p['wout'].astype(bf16),
                     preferred_element_type=jnp.float32) + p['bout']
    return jnp.transpose(out, (0, 2, 1))                          # (B, Fout, N)


if __name__ == "__main__":
    jax.config.update("jax_default_matmul_precision", "float32")
    B, Fin, Fout, N, K = 2, 4, 32, 16, 8

    key = jax.random.PRNGKey(0)
    kx, kp = jax.random.split(key)
    x = jax.random.normal(kx, (B, Fin, N), jnp.float32)           # [B, Fin, N]
    params = init_params(kp, Fin, Fout, K)

    out = edge_block_forward(x, params, K, Fout)
    out = jax.block_until_ready(out)
    assert out.shape == (B, Fout, N), out.shape

    ref = reference_forward(x, params, K, Fout)
    err = float(jnp.max(jnp.abs(out - ref)))
    assert jnp.allclose(out, ref, atol=1e-2, rtol=1e-2), err

    print("KERNEL_OK")
</pallas_src>

<mosaic_0001>
module attributes {stable_mosaic.version = 11 : i64} {
  func.func @dist_kernel(%arg0: i32, %arg1: i32, %arg2: i32, %arg3: memref<1x16x4xf32, #tpu.memory_space<vmem>>, %arg4: memref<1x16x4xf32, #tpu.memory_space<vmem>>, %arg5: memref<1x1x16xf32, #tpu.memory_space<vmem>>, %arg6: memref<1x16x16xf32, #tpu.memory_space<vmem>>) attributes {dimension_semantics = [#tpu.dimension_semantics<parallel>, #tpu.dimension_semantics<parallel>, #tpu.dimension_semantics<parallel>], iteration_bounds = array<i64: 2, 1, 1>, scalar_prefetch = 0 : i64, scratch_operands = 0 : i64, tpu.core_type = #tpu.core_type<tc>, window_params = [{transform_indices = @transform_0, window_bounds = array<i64: 1, 16, 4>}, {transform_indices = @transform_1, window_bounds = array<i64: 1, 16, 4>}, {transform_indices = @transform_2, window_bounds = array<i64: 1, 1, 16>}, {transform_indices = @transform_3, window_bounds = array<i64: 1, 16, 16>}]} {
    %c0 = arith.constant 0 : index
    %c0_0 = arith.constant 0 : index
    %c0_1 = arith.constant 0 : index
    %0 = vector.load %arg3[%c0, %c0_0, %c0_1] : memref<1x16x4xf32, #tpu.memory_space<vmem>>, vector<1x16x4xf32>
    %1 = vector.shape_cast %0 : vector<1x16x4xf32> to vector<16x4xf32>
    %c0_2 = arith.constant 0 : index
    %c0_3 = arith.constant 0 : index
    %c0_4 = arith.constant 0 : index
    %2 = vector.load %arg4[%c0_2, %c0_3, %c0_4] : memref<1x16x4xf32, #tpu.memory_space<vmem>>, vector<1x16x4xf32>
    %3 = vector.shape_cast %2 : vector<1x16x4xf32> to vector<16x4xf32>
    %cst = arith.constant dense<0.000000e+00> : vector<16x16xf32>
    %4 = tpu.matmul %1, %3, %cst {dimension_numbers = #tpu.dot_dimension_numbers<[1], [1], [0], [0], [0, 0, 1, 0], [], []>, precision = #tpu.contract_precision<fp32>} : vector<16x4xf32>, vector<16x4xf32>, vector<16x16xf32> -> vector<16x16xf32>
    %5 = arith.mulf %1, %1 : vector<16x4xf32>
    %cst_5 = arith.constant dense<0.000000e+00> : vector<16xf32>
    %6 = vector.multi_reduction <add>, %5, %cst_5 [1] : vector<16x4xf32> to vector<16xf32>
    %7 = vector.shape_cast %6 : vector<16xf32> to vector<16x1xf32>
    %cst_6 = arith.constant -2.000000e+00 : f32
    %8 = vector.broadcast %cst_6 : f32 to vector<16x16xf32>
    %9 = arith.mulf %8, %4 : vector<16x16xf32>
    %10 = vector.broadcast %7 : vector<16x1xf32> to vector<16x16xf32>
    %11 = arith.addf %9, %10 : vector<16x16xf32>
    %c0_7 = arith.constant 0 : index
    %c0_8 = arith.constant 0 : index
    %c0_9 = arith.constant 0 : index
    %12 = vector.load %arg5[%c0_7, %c0_8, %c0_9] : memref<1x1x16xf32, #tpu.memory_space<vmem>>, vector<1x1x16xf32>
    %13 = vector.shape_cast %12 : vector<1x1x16xf32> to vector<1x16xf32>
    %14 = vector.broadcast %13 : vector<1x16xf32> to vector<16x16xf32>
    %15 = arith.addf %11, %14 : vector<16x16xf32>
    %c0_10 = arith.constant 0 : index
    %c0_11 = arith.constant 0 : index
    %c0_12 = arith.constant 0 : index
    %16 = vector.load %arg6[%c0_10, %c0_11, %c0_12] : memref<1x16x16xf32, #tpu.memory_space<vmem>>, vector<1x16x16xf32>
    %17 = vector.shape_cast %16 : vector<1x16x16xf32> to vector<16x16xf32>
    %18 = vector.shape_cast %15 : vector<16x16xf32> to vector<1x16x16xf32>
    tpu.vector_store %arg6[%c0_10, %c0_11, %c0_12], %18 {strides = array<i32>} : memref<1x16x16xf32, #tpu.memory_space<vmem>>, vector<1x16x16xf32>,
    return
  }
  func.func @transform_0(%arg0: i32, %arg1: i32, %arg2: i32) -> (i32, i32, i32) {
    %c0_i32 = arith.constant 0 : i32
    %c0_i32_0 = arith.constant 0 : i32
    return %arg0, %arg1, %c0_i32 : i32, i32, i32
  }
  func.func @transform_1(%arg0: i32, %arg1: i32, %arg2: i32) -> (i32, i32, i32) {
    %c0_i32 = arith.constant 0 : i32
    %c0_i32_0 = arith.constant 0 : i32
    return %arg0, %arg2, %c0_i32 : i32, i32, i32
  }
  func.func @transform_2(%arg0: i32, %arg1: i32, %arg2: i32) -> (i32, i32, i32) {
    %c0_i32 = arith.constant 0 : i32
    %c0_i32_0 = arith.constant 0 : i32
    return %arg0, %c0_i32, %arg2 : i32, i32, i32
  }
  func.func @transform_3(%arg0: i32, %arg1: i32, %arg2: i32) -> (i32, i32, i32) {
    %c0_i32 = arith.constant 0 : i32
    return %arg0, %arg1, %arg2 : i32, i32, i32
  }
}

</mosaic_0001>

<llo_original>
// kernel: tpu_custom_call.1
$region0: #{tpu_custom_call.1}
  #allocation0 [shape = 'u32[]', space=smem, size = 0x4, offset = 0x4, fixed_abs, tag = 'smem constant byte address 0x4 - core index']
  #allocation1 [shape = 'u32[144,128]{1,0:T(1,128)}', space=vmem, size = 0x12000, scoped, tag = 'internal scratch']
  %s0 = inlined_call_operand.vmem [shape: f32[2,16,4], index: 0, kind: input, shape index: {}]
  %s1 = inlined_call_operand.vmem [shape: f32[2,16,4], index: 1, kind: input, shape index: {}]
  %s2 = inlined_call_operand.vmem [shape: f32[2,1,16], index: 2, kind: input, shape index: {}]
  %s3 = inlined_call_operand.hbm [shape: f32[2,16,16], index: 3, kind: output, shape index: {}]
  %s4 = sld [smem:[#allocation0]]
  $region45: #{tpu_custom_call.1} parent=0
    _
  %s6 = ssub.s32 1, %s4
  %s7 = scalar_select 0, %s6, %s4
  $region1: #{tpu_custom_call.1} parent=0
    #allocation2 [shape = 'u8[16384]{0}', space=vmem, size = 0x4000, scoped, tag = 'output window, operand 0']
    #allocation3 [shape = 's32[2]{0}', space=sflag, size = 0x8, scoped, tag = 'scoped memory for tpu_custom_call.1']
    %8 = vsyncpa [#allocation3], 0
    %s9 = scalar_lea.sflag [#allocation3], 1
    %10 = vsyncpa %s9, 0
    loop: start=0, step=1, limit=4
    $region2: #{tpu_custom_call.1} parent=1 // loop_pre_header
      _
    $region3: #{tpu_custom_call.1} parent=1 // loop_header
      %s12 = sphi 0, %s16
      %p13 = scmp.ge.s32.totalorder %s12, 4
      %s19 = sphi 0, %s38
      %s20 = sphi 0, %s34
      %s21 = sphi 0, %s30
      %s22 = sphi 0, %s19
      %s23 = sphi 0, %s20
      %s24 = sphi 0, %s21
      %s25 = sphi 0, %s22
      %s26 = sphi 0, %s23
      %s27 = sphi 0, %s24
      %s43 = sphi 0, %s45
      %s46 = sphi 0, %s43
      %s47 = sphi 0, %s46
      %s63 = sphi 0, %s47
      %s71 = sphi 0, %s73
      %s74 = sphi 0, %s71
      %s75 = sphi 0, %s74
      %s91 = sphi 0, %s75
      %s99 = sphi 0, %s101
      %s102 = sphi 0, %s99
      %s103 = sphi 0, %s102
      %s119 = sphi 0, %s103
      %s129 = sphi 0, %s131
      %s132 = sphi 0, %s129
      %s133 = sphi 0, %s132
      %s149 = sphi 0, %s133
    $region4: #{tpu_custom_call.1} parent=1 // loop_header_branch
      %15 = sbr.rel (%p13) target = $region8
    $region5: #{tpu_custom_call.1} parent=1 // loop_body
      %s17 = ssub.s32 %s12, 1
      %s18 = ssub.s32 %s12, 2
      %s28 = sadd.s32 1, %s21
      %p29 = scmp.ge.s32.totalorder %s28, 1
      %s30 = scalar_select %p29, 0, %s28
      %s31 = sadd.s32 1, %s20
      %s32 = scalar_select %p29, %s31, %s20
      %p33 = scmp.ge.s32.totalorder %s32, 1
      %s34 = scalar_select %p33, 0, %s32
      %s35 = sadd.s32 1, %s19
      %s36 = scalar_select %p33, %s35, %s19
      %p37 = scmp.ge.s32.totalorder %s36, 2
      %s38 = scalar_select %p37, 0, %s36
      %s39 = ssub.s32 %s19, %s38
      %s40 = ssub.s32 %s20, %s34
      %s41 = sor.u32 %s39, %s40
      %p42 = scmp.eq.s32.totalorder %s41, 0
      %s44 = sadd.s32 %s43, 1
      %s45 = scalar_select %p42, %s43, %s44
      %p48 = pneg %p42
      %p49 = scmp.eq.s32.totalorder %s12, 1
      %p50 = por %p48, %p49
      %p51 = scmp.ne.s32.totalorder %s43, %s46
      %p52 = scmp.eq.s32.totalorder %s12, 0
      %p53 = por %p51, %p52
      %p54 = scmp.ne.s32.totalorder %s43, %s46
      %p55 = scmp.eq.s32.totalorder %s17, 1
      %p56 = por %p54, %p55
      %p57 = scmp.ne.s32.totalorder %s46, %s47
      %p58 = scmp.eq.s32.totalorder %s17, 0
      %p59 = por %p57, %p58
      %p60 = scmp.ne.s32.totalorder %s46, %s47
      %p61 = scmp.eq.s32.totalorder %s18, 1
      %p62 = por %p60, %p61
      %p64 = scmp.ne.s32.totalorder %s47, %s63
      %p65 = scmp.eq.s32.totalorder %s18, 0
      %p66 = por %p64, %p65
      %s67 = ssub.s32 %s19, %s38
      %s68 = ssub.s32 %s21, %s30
      %s69 = sor.u32 %s67, %s68
      %p70 = scmp.eq.s32.totalorder %s69, 0
      %s72 = sadd.s32 %s71, 1
      %s73 = scalar_select %p70, %s71, %s72
      %p76 = pneg %p70
      %p77 = scmp.eq.s32.totalorder %s12, 1
      %p78 = por %p76, %p77
      %p79 = scmp.ne.s32.totalorder %s71, %s74
      %p80 = scmp.eq.s32.totalorder %s12, 0
      %p81 = por %p79, %p80
      %p82 = scmp.ne.s32.totalorder %s71, %s74
      %p83 = scmp.eq.s32.totalorder %s17, 1
      %p84 = por %p82, %p83
      %p85 = scmp.ne.s32.totalorder %s74, %s75
      %p86 = scmp.eq.s32.totalorder %s17, 0
      %p87 = por %p85, %p86
      %p88 = scmp.ne.s32.totalorder %s74, %s75
      %p89 = scmp.eq.s32.totalorder %s18, 1
      %p90 = por %p88, %p89
      %p92 = scmp.ne.s32.totalorder %s75, %s91
      %p93 = scmp.eq.s32.totalorder %s18, 0
      %p94 = por %p92, %p93
      %s95 = ssub.s32 %s19, %s38
      %s96 = ssub.s32 %s21, %s30
      %s97 = sor.u32 %s95, %s96
      %p98 = scmp.eq.s32.totalorder %s97, 0
      %s100 = sadd.s32 %s99, 1
      %s101 = scalar_select %p98, %s99, %s100
      %p104 = pneg %p98
      %p105 = scmp.eq.s32.totalorder %s12, 1
      %p106 = por %p104, %p105
      %p107 = scmp.ne.s32.totalorder %s99, %s102
      %p108 = scmp.eq.s32.totalorder %s12, 0
      %p109 = por %p107, %p108
      %p110 = scmp.ne.s32.totalorder %s99, %s102
      %p111 = scmp.eq.s32.totalorder %s17, 1
      %p112 = por %p110, %p111
      %p113 = scmp.ne.s32.totalorder %s102, %s103
      %p114 = scmp.eq.s32.totalorder %s17, 0
      %p115 = por %p113, %p114
      %p116 = scmp.ne.s32.totalorder %s102, %s103
      %p117 = scmp.eq.s32.totalorder %s18, 1
      %p118 = por %p116, %p117
      %p120 = scmp.ne.s32.totalorder %s103, %s119
      %p121 = scmp.eq.s32.totalorder %s18, 0
      %p122 = por %p120, %p121
      %s123 = ssub.s32 %s19, %s38
      %s124 = ssub.s32 %s20, %s34
      %s125 = sor.u32 %s123, %s124
      %s126 = ssub.s32 %s21, %s30
      %s127 = sor.u32 %s125, %s126
      %p128 = scmp.eq.s32.totalorder %s127, 0
      %s130 = sadd.s32 %s129, 1
      %s131 = scalar_select %p128, %s129, %s130
      %p134 = pneg %p128
      %p135 = scmp.eq.s32.totalorder %s12, 1
      %p136 = por %p134, %p135
      %p137 = scmp.ne.s32.totalorder %s129, %s132
      %p138 = scmp.eq.s32.totalorder %s12, 0
      %p139 = por %p137, %p138
      %p140 = scmp.ne.s32.totalorder %s129, %s132
      %p141 = scmp.eq.s32.totalorder %s17, 1
      %p142 = por %p140, %p141
      %p143 = scmp.ne.s32.totalorder %s132, %s133
      %p144 = scmp.eq.s32.totalorder %s17, 0
      %p145 = por %p143, %p144
      %p146 = scmp.ne.s32.totalorder %s132, %s133
      %p147 = scmp.eq.s32.totalorder %s18, 1
      %p148 = por %p146, %p147
      %p150 = scmp.ne.s32.totalorder %s133, %s149
      %p151 = scmp.eq.s32.totalorder %s18, 0
      %p152 = por %p150, %p151
      %p153 = scmp.le.s32.totalorder 1, %s12
      %p154 = scmp.lt.s32.totalorder %s12, 3
      %p155 = pnand %p153, %p154
      %p156 = pneg %p155
      // Predicated region
      $region9: #{tpu_custom_call.1} parent=5 // pred_check
        _
      $region10: #{tpu_custom_call.1} parent=5 // pred_check_branch
        %158 = sbr.rel (%p155) target = $region12
      $region11: #{tpu_custom_call.1} parent=5 // pred_region
        %s159 = ssub.s32 %s12, 1
      $region12: #{tpu_custom_call.1} parent=5 // pred_fallthru
        _
      %p160 = scmp.lt.s32.totalorder %s12, 2
      // Predicated region
      $region13: #{tpu_custom_call.1} parent=5 // pred_check
        %p161 = pneg %p160
      $region14: #{tpu_custom_call.1} parent=5 // pred_check_branch
        %163 = sbr.rel (%p161) target = $region16
      $region15: #{tpu_custom_call.1} parent=5 // pred_region
        // Predicated region
        $region17: #{tpu_custom_call.1} parent=15 // pred_check
          %p164 = pneg %p53
        $region18: #{tpu_custom_call.1} parent=15 // pred_check_branch
          %166 = sbr.rel (%p164) target = $region20
        $region19: #{tpu_custom_call.1} parent=15 // pred_region
          %s167 = smul.u32 2, %s20
          %p168 = scmp.lt.s32.totalorder %s19, 1
          %s169 = scalar_select %p168, %s19, 1
          %p170 = scmp.lt.s32.totalorder %s167, 1
          %s171 = scalar_select %p170, %s167, 1
          %s172 = smul.addr %s169, 2
          %s173 = sadd.s32 %s171, %s172
          %s174 = smul.addr %s173, 8
          %s175 = scalar_lea.vmem %s0, %s174
          %s176 = smul.u32 2, %s20
        $region20: #{tpu_custom_call.1} parent=15 // pred_fallthru
          _
        // Predicated region
        $region21: #{tpu_custom_call.1} parent=15 // pred_check
          %p177 = pneg %p81
        $region22: #{tpu_custom_call.1} parent=15 // pred_check_branch
          %179 = sbr.rel (%p177) target = $region24
        $region23: #{tpu_custom_call.1} parent=15 // pred_region
          %s180 = smul.u32 2, %s21
          %p181 = scmp.lt.s32.totalorder %s19, 1
          %s182 = scalar_select %p181, %s19, 1
          %p183 = scmp.lt.s32.totalorder %s180, 1
          %s184 = scalar_select %p183, %s180, 1
          %s185 = smul.addr %s182, 2
          %s186 = sadd.s32 %s184, %s185
          %s187 = smul.addr %s186, 8
          %s188 = scalar_lea.vmem %s1, %s187
          %s189 = smul.u32 2, %s21
        $region24: #{tpu_custom_call.1} parent=15 // pred_fallthru
          _
        // Predicated region
        $region25: #{tpu_custom_call.1} parent=15 // pred_check
          %p190 = pneg %p109
        $region26: #{tpu_custom_call.1} parent=15 // pred_check_branch
          %192 = sbr.rel (%p190) target = $region28
        $region27: #{tpu_custom_call.1} parent=15 // pred_region
          %p193 = scmp.lt.s32.totalorder %s19, 1
          %s194 = scalar_select %p193, %s19, 1
          %p195 = scmp.lt.s32.totalorder %s21, 0
          %s196 = scalar_select %p195, %s21, 0
          %s197 = sadd.s32 %s196, %s194
          %s198 = scalar_lea.vmem %s2, %s197
        $region28: #{tpu_custom_call.1} parent=15 // pred_fallthru
          _
      $region16: #{tpu_custom_call.1} parent=5 // pred_fallthru
        _
      %p199 = scmp.le.s32.totalorder 1, %s12
      %p200 = scmp.lt.s32.totalorder %s12, 3
      %p201 = pnand %p199, %p200
      %p202 = pneg %p201
      // Predicated region
      $region29: #{tpu_custom_call.1} parent=5 // pred_check
        _
      $region30: #{tpu_custom_call.1} parent=5 // pred_check_branch
        %204 = sbr.rel (%p201) target = $region32
      $region31: #{tpu_custom_call.1} parent=5 // pred_region
        %s205 = ssub.s32 %s12, 1
        %s206 = smul.u32 2, %s23
        %p207 = scmp.lt.s32.totalorder %s22, 1
        %s208 = scalar_select %p207, %s22, 1
        %p209 = scmp.lt.s32.totalorder %s206, 1
        %s210 = scalar_select %p209, %s206, 1
        %s211 = smul.addr %s208, 2
        %s212 = sadd.s32 %s210, %s211
        %s213 = smul.addr %s212, 8
        %s214 = scalar_lea.vmem %s0, %s213
        %p215 = pneg %p59
        %p216 = pneg %p56
        %s217 = smul.u32 2, %s24
        %p218 = scmp.lt.s32.totalorder %s22, 1
        %s219 = scalar_select %p218, %s22, 1
        %p220 = scmp.lt.s32.totalorder %s217, 1
        %s221 = scalar_select %p220, %s217, 1
        %s222 = smul.addr %s219, 2
        %s223 = sadd.s32 %s221, %s222
        %s224 = smul.addr %s223, 8
        %s225 = scalar_lea.vmem %s1, %s224
        %p226 = pneg %p87
        %p227 = pneg %p84
        %p228 = scmp.lt.s32.totalorder %s22, 1
        %s229 = scalar_select %p228, %s22, 1
        %p230 = scmp.lt.s32.totalorder %s24, 0
        %s231 = scalar_select %p230, %s24, 0
        %s232 = sadd.s32 %s231, %s229
        %s233 = scalar_lea.vmem %s2, %s232
        %p234 = pneg %p115
        %p235 = pneg %p112
        %p236 = pneg %p145
        %p237 = pneg %p142
        %s238 = sand.u32 %s132, 1
        %s239 = scalar_lea.sflag [#allocation3], %s238
        %s240 = sand.u32 %s132, 1
        %s241 = smul.addr %s240, 16
        %s242 = scalar_lea.vmem [#allocation2], %s241
        %s243 = smul.u32 2, %s23
        %p244 = scmp.lt.s32.totalorder %s22, 1
        %s245 = scalar_select %p244, %s22, 1
        %p246 = scmp.lt.s32.totalorder %s243, 1
        %s247 = scalar_select %p246, %s243, 1
        %s248 = smul.addr %s245, 2
        %s249 = sadd.s32 %s247, %s248
        %s250 = smul.addr %s249, 8
        %s251 = scalar_lea.vmem %s0, %s250
        %s252 = smul.u32 2, %s23
        %s253 = smul.u32 2, %s24
        %p254 = scmp.lt.s32.totalorder %s22, 1
        %s255 = scalar_select %p254, %s22, 1
        %p256 = scmp.lt.s32.totalorder %s253, 1
        %s257 = scalar_select %p256, %s253, 1
        %s258 = smul.addr %s255, 2
        %s259 = sadd.s32 %s257, %s258
        %s260 = smul.addr %s259, 8
        %s261 = scalar_lea.vmem %s1, %s260
        %s262 = smul.u32 2, %s24
        %p263 = scmp.lt.s32.totalorder %s22, 1
        %s264 = scalar_select %p263, %s22, 1
        %p265 = scmp.lt.s32.totalorder %s24, 0
        %s266 = scalar_select %p265, %s24, 0
        %s267 = sadd.s32 %s266, %s264
        %s268 = scalar_lea.vmem %s2, %s267
        %s269 = smul.u32 2, %s23
        %v270 = vld [vmem:[%s251] sm:$0xff]
        %v271 = vld [vmem:[%s251 + $0x8] sm:$0xff]
        %v272 = vld [vmem:[%s261] sm:$0xff]
        %v273 = vld [vmem:[%s261 + $0x8] sm:$0xff]
        %vm274 = vcmask 31744
        %v276 = vsel %vm274, %v270, 0
        %v279 = vsel %vm274, %v271, 0
        %v282 = vsel %vm274, %v272, 0
        %v285 = vsel %vm274, %v273, 0
        %287 = vmatprep.subr.mxu0 0.0
        %v288 = vand.u32 %v282, 4294901760
        %289 = vmatpush1.xpose.msra.mxu0 %v288
        %290 = vmatprep.subr.mxu0 0.0
        %v291 = vand.u32 %v285, 4294901760
        %292 = vmatpush1.xpose.msra.mxu0 %v291
        %293 = vmatprep.subr.mxu0 0.0
        %294 = vmatpush1.xpose.msra.mxu0 0.0
        %295 = vmatprep.subr.mxu0 0.0
        %296 = vmatpush1.xpose.msra.mxu0 0.0
        %297 = vmatprep.subr.mxu0 0.0
        %298 = vmatpush1.xpose.msra.mxu0 0.0
        %299 = vmatprep.subr.mxu0 0.0
        %300 = vmatpush1.xpose.msra.mxu0 0.0
        %301 = vmatprep.subr.mxu0 0.0
        %302 = vmatpush1.xpose.msra.mxu0 0.0
        %303 = vmatprep.subr.mxu0 0.0
        %304 = vmatpush1.xpose.msra.mxu0 0.0
        %305 = vmatprep.subr.mxu0 0.0
        %306 = vmatpush1.xpose.msra.mxu0 0.0
        %307 = vmatprep.subr.mxu0 0.0
        %308 = vmatpush1.xpose.msra.mxu0 0.0
        %309 = vmatprep.subr.mxu0 0.0
        %310 = vmatpush1.xpose.msra.mxu0 0.0
        %311 = vmatprep.subr.mxu0 0.0
        %312 = vmatpush1.xpose.msra.mxu0 0.0
        %313 = vmatprep.subr.mxu0 0.0
        %314 = vmatpush1.xpose.msra.mxu0 0.0
        %315 = vmatprep.subr.mxu0 0.0
        %316 = vmatpush1.xpose.msra.mxu0 0.0
        %317 = vmatprep.subr.mxu0 0.0
        %318 = vmatpush1.xpose.msra.mxu0 0.0
        %319 = vmatprep.subr.mxu0 0.0
        %320 = vmatpush1.xpose.msra.mxu0 0.0
        %321 = vmatprep.subr.mxu0 0.0
        %322 = vmatpush1.xpose.msra.mxu0 0.0
        %323 = vmatprep.subr.mxu0 0.0
        %324 = vmatpush1.xpose.msra.mxu0 0.0
        %325 = vmatprep.subr.mxu0 0.0
        %326 = vmatpush1.xpose.msra.mxu0 0.0
        %327 = vmatprep.subr.mxu0 0.0
        %328 = vmatpush1.xpose.msra.mxu0 0.0
        %329 = vmatprep.subr.mxu0 0.0
        %330 = vmatpush1.xpose.msra.mxu0 0.0
        %331 = vmatprep.subr.mxu0 0.0
        %332 = vmatpush1.xpose.msra.mxu0 0.0
        %333 = vmatprep.subr.mxu0 0.0
        %334 = vmatpush1.xpose.msra.mxu0 0.0
        %335 = vmatprep.subr.mxu0 0.0
        %336 = vmatpush1.xpose.msra.mxu0 0.0
        %337 = vmatprep.subr.mxu0 0.0
        %338 = vmatpush1.xpose.msra.mxu0 0.0
        %339 = vmatprep.subr.mxu0 0.0
        %340 = vmatpush1.xpose.msra.mxu0 0.0
        %341 = vmatprep.subr.mxu0 0.0
        %342 = vmatpush1.xpose.msra.mxu0 0.0
        %343 = vmatprep.subr.mxu0 0.0
        %344 = vmatpush1.xpose.msra.mxu0 0.0
        %345 = vmatprep.subr.mxu0 0.0
        %346 = vmatpush1.xpose.msra.mxu0 0.0
        %347 = vmatprep.subr.mxu0 0.0
        %348 = vmatpush1.xpose.msra.mxu0 0.0
        %349 = vmatprep.subr.mxu0 0.0
        %350 = vmatpush1.xpose.msra.mxu0 0.0
        %351 = vmatprep.subr.mxu0 0.0
        %352 = vmatpush1.xpose.msra.mxu0 0.0
        %353 = vmatprep.mubr.f32.mxu0 0.0
        %v354 = vand.u32 %v276, 4294901760
        %v355 = vsub.f32 %v276, %v354
        %v356 = vand.u32 %v355, 4294901760
        %v357 = vsub.f32 %v355, %v356
        %v358 = vand.u32 %v357, 4294901760
        %359 = vmatmul.mubr.f32.gmra.mrb[0].mxu0 %v358
        %v360 = vpop.f32.mrb[0].mxu0
        %v361 = vadd.f32 0.0, %v360
        %v362 = vpop.f32.mrb[0].mxu0
        %363 = vmatprep.mubr.f32.mxu0 0.0
        %v364 = vand.u32 %v279, 4294901760
        %v365 = vsub.f32 %v279, %v364
        %v366 = vand.u32 %v365, 4294901760
        %v367 = vsub.f32 %v365, %v366
        %v368 = vand.u32 %v367, 4294901760
        %369 = vmatmul.mubr.f32.gmra.mrb[0].mxu0 %v368
        %v370 = vpop.f32.mrb[0].mxu0
        %v371 = vadd.f32 0.0, %v370
        %v372 = vpop.f32.mrb[0].mxu0
        %373 = vdwg.mxu0
        %374 = vmatprep.subr.mxu0 0.0
        %v375 = vand.u32 %v282, 4294901760
        %v376 = vsub.f32 %v282, %v375
        %v377 = vand.u32 %v376, 4294901760
        %v378 = vsub.f32 %v376, %v377
        %v379 = vand.u32 %v378, 4294901760
        %380 = vmatpush1.xpose.msra.mxu0 %v379
        %381 = vmatprep.subr.mxu0 0.0
        %v382 = vand.u32 %v285, 4294901760
        %v383 = vsub.f32 %v285, %v382
        %v384 = vand.u32 %v383, 4294901760
        %v385 = vsub.f32 %v383, %v384
        %v386 = vand.u32 %v385, 4294901760
        %387 = vmatpush1.xpose.msra.mxu0 %v386
        %388 = vmatprep.subr.mxu0 0.0
        %389 = vmatpush1.xpose.msra.mxu0 0.0
        %390 = vmatprep.subr.mxu0 0.0
        %391 = vmatpush1.xpose.msra.mxu0 0.0
        %392 = vmatprep.subr.mxu0 0.0
        %393 = vmatpush1.xpose.msra.mxu0 0.0
        %394 = vmatprep.subr.mxu0 0.0
        %395 = vmatpush1.xpose.msra.mxu0 0.0
        %396 = vmatprep.subr.mxu0 0.0
        %397 = vmatpush1.xpose.msra.mxu0 0.0
        %398 = vmatprep.subr.mxu0 0.0
        %399 = vmatpush1.xpose.msra.mxu0 0.0
        %400 = vmatprep.subr.mxu0 0.0
        %401 = vmatpush1.xpose.msra.mxu0 0.0
        %402 = vmatprep.subr.mxu0 0.0
        %403 = vmatpush1.xpose.msra.mxu0 0.0
        %404 = vmatprep.subr.mxu0 0.0
        %405 = vmatpush1.xpose.msra.mxu0 0.0
        %406 = vmatprep.subr.mxu0 0.0
        %407 = vmatpush1.xpose.msra.mxu0 0.0
        %408 = vmatprep.subr.mxu0 0.0
        %409 = vmatpush1.xpose.msra.mxu0 0.0
        %410 = vmatprep.subr.mxu0 0.0
        %411 = vmatpush1.xpose.msra.mxu0 0.0
        %412 = vmatprep.subr.mxu0 0.0
        %413 = vmatpush1.xpose.msra.mxu0 0.0
        %414 = vmatprep.subr.mxu0 0.0
        %415 = vmatpush1.xpose.msra.mxu0 0.0
        %416 = vmatprep.subr.mxu0 0.0
        %417 = vmatpush1.xpose.msra.mxu0 0.0
        %418 = vmatprep.subr.mxu0 0.0
        %419 = vmatpush1.xpose.msra.mxu0 0.0
        %420 = vmatprep.subr.mxu0 0.0
        %421 = vmatpush1.xpose.msra.mxu0 0.0
        %422 = vmatprep.subr.mxu0 0.0
        %423 = vmatpush1.xpose.msra.mxu0 0.0
        %424 = vmatprep.subr.mxu0 0.0
        %425 = vmatpush1.xpose.msra.mxu0 0.0
        %426 = vmatprep.subr.mxu0 0.0
        %427 = vmatpush1.xpose.msra.mxu0 0.0
        %428 = vmatprep.subr.mxu0 0.0
        %429 = vmatpush1.xpose.msra.mxu0 0.0
        %430 = vmatprep.subr.mxu0 0.0
        %431 = vmatpush1.xpose.msra.mxu0 0.0
        %432 = vmatprep.subr.mxu0 0.0
        %433 = vmatpush1.xpose.msra.mxu0 0.0
        %434 = vmatprep.subr.mxu0 0.0
        %435 = vmatpush1.xpose.msra.mxu0 0.0
        %436 = vmatprep.subr.mxu0 0.0
        %437 = vmatpush1.xpose.msra.mxu0 0.0
        %438 = vmatprep.subr.mxu0 0.0
        %439 = vmatpush1.xpose.msra.mxu0 0.0
        %440 = vmatprep.subr.mxu0 0.0
        %441 = vmatpush1.xpose.msra.mxu0 0.0
        %442 = vmatprep.subr.mxu0 0.0
        %443 = vmatpush1.xpose.msra.mxu0 0.0
        %444 = vmatprep.subr.mxu0 0.0
        %445 = vmatpush1.xpose.msra.mxu0 0.0
        %446 = vmatprep.subr.mxu0 0.0
        %447 = vmatpush1.xpose.msra.mxu0 0.0
        %448 = vmatprep.mubr.f32.mxu0 0.0
        %v449 = vand.u32 %v276, 4294901760
        %450 = vmatmul.mubr.f32.gmra.mrb[0].mxu0 %v449
        %v451 = vpop.f32.mrb[0].mxu0
        %v452 = vadd.f32 %v361, %v451
        %v453 = vpop.f32.mrb[0].mxu0
        %454 = vmatprep.mubr.f32.mxu0 0.0
        %v455 = vand.u32 %v279, 4294901760
        %456 = vmatmul.mubr.f32.gmra.mrb[0].mxu0 %v455
        %v457 = vpop.f32.mrb[0].mxu0
        %v458 = vadd.f32 %v371, %v457
        %v459 = vpop.f32.mrb[0].mxu0
        %460 = vdwg.mxu0
        %461 = vmatprep.subr.mxu0 0.0
        %v462 = vand.u32 %v282, 4294901760
        %v463 = vsub.f32 %v282, %v462
        %464 = vmatpush1.xpose.msra.mxu0 %v463
        %465 = vmatprep.subr.mxu0 0.0
        %v466 = vand.u32 %v285, 4294901760
        %v467 = vsub.f32 %v285, %v466
        %468 = vmatpush1.xpose.msra.mxu0 %v467
        %469 = vmatprep.subr.mxu0 0.0
        %470 = vmatpush1.xpose.msra.mxu0 0.0
        %471 = vmatprep.subr.mxu0 0.0
        %472 = vmatpush1.xpose.msra.mxu0 0.0
        %473 = vmatprep.subr.mxu0 0.0
        %474 = vmatpush1.xpose.msra.mxu0 0.0
        %475 = vmatprep.subr.mxu0 0.0
        %476 = vmatpush1.xpose.msra.mxu0 0.0
        %477 = vmatprep.subr.mxu0 0.0
        %478 = vmatpush1.xpose.msra.mxu0 0.0
        %479 = vmatprep.subr.mxu0 0.0
        %480 = vmatpush1.xpose.msra.mxu0 0.0
        %481 = vmatprep.subr.mxu0 0.0
        %482 = vmatpush1.xpose.msra.mxu0 0.0
        %483 = vmatprep.subr.mxu0 0.0
        %484 = vmatpush1.xpose.msra.mxu0 0.0
        %485 = vmatprep.subr.mxu0 0.0
        %486 = vmatpush1.xpose.msra.mxu0 0.0
        %487 = vmatprep.subr.mxu0 0.0
        %488 = vmatpush1.xpose.msra.mxu0 0.0
        %489 = vmatprep.subr.mxu0 0.0
        %490 = vmatpush1.xpose.msra.mxu0 0.0
        %491 = vmatprep.subr.mxu0 0.0
        %492 = vmatpush1.xpose.msra.mxu0 0.0
        %493 = vmatprep.subr.mxu0 0.0
        %494 = vmatpush1.xpose.msra.mxu0 0.0
        %495 = vmatprep.subr.mxu0 0.0
        %496 = vmatpush1.xpose.msra.mxu0 0.0
        %497 = vmatprep.subr.mxu0 0.0
        %498 = vmatpush1.xpose.msra.mxu0 0.0
        %499 = vmatprep.subr.mxu0 0.0
        %500 = vmatpush1.xpose.msra.mxu0 0.0
        %501 = vmatprep.subr.mxu0 0.0
        %502 = vmatpush1.xpose.msra.mxu0 0.0
        %503 = vmatprep.subr.mxu0 0.0
        %504 = vmatpush1.xpose.msra.mxu0 0.0
        %505 = vmatprep.subr.mxu0 0.0
        %506 = vmatpush1.xpose.msra.mxu0 0.0
        %507 = vmatprep.subr.mxu0 0.0
        %508 = vmatpush1.xpose.msra.mxu0 0.0
        %509 = vmatprep.subr.mxu0 0.0
        %510 = vmatpush1.xpose.msra.mxu0 0.0
        %511 = vmatprep.subr.mxu0 0.0
        %512 = vmatpush1.xpose.msra.mxu0 0.0
        %513 = vmatprep.subr.mxu0 0.0
        %514 = vmatpush1.xpose.msra.mxu0 0.0
        %515 = vmatprep.subr.mxu0 0.0
        %516 = vmatpush1.xpose.msra.mxu0 0.0
        %517 = vmatprep.subr.mxu0 0.0
        %518 = vmatpush1.xpose.msra.mxu0 0.0
        %519 = vmatprep.subr.mxu0 0.0
        %520 = vmatpush1.xpose.msra.mxu0 0.0
        %521 = vmatprep.subr.mxu0 0.0
        %522 = vmatpush1.xpose.msra.mxu0 0.0
        %523 = vmatprep.subr.mxu0 0.0
        %524 = vmatpush1.xpose.msra.mxu0 0.0
        %525 = vmatprep.subr.mxu0 0.0
        %526 = vmatpush1.xpose.msra.mxu0 0.0
        %527 = vmatprep.subr.mxu0 0.0
        %528 = vmatpush1.xpose.msra.mxu0 0.0
        %529 = vmatprep.mubr.f32.mxu0 0.0
        %v530 = vand.u32 %v276, 4294901760
        %v531 = vsub.f32 %v276, %v530
        %532 = vmatmul.mubr.f32.gmra.mrb[0].mxu0 %v531
        %v533 = vpop.f32.mrb[0].mxu0
        %v534 = vadd.f32 %v452, %v533
        %v535 = vpop.f32.mrb[0].mxu0
        %536 = vmatprep.mubr.f32.mxu0 0.0
        %v537 = vand.u32 %v279, 4294901760
        %v538 = vsub.f32 %v279, %v537
        %539 = vmatmul.mubr.f32.gmra.mrb[0].mxu0 %v538
        %v540 = vpop.f32.mrb[0].mxu0
        %v541 = vadd.f32 %v458, %v540
        %v542 = vpop.f32.mrb[0].mxu0
        %543 = vdwg.mxu0
        %544 = vmatprep.subr.mxu0 0.0
        %v545 = vand.u32 %v282, 4294901760
        %546 = vmatpush1.xpose.msra.mxu0 %v545
        %547 = vmatprep.subr.mxu0 0.0
        %v548 = vand.u32 %v285, 4294901760
        %549 = vmatpush1.xpose.msra.mxu0 %v548
        %550 = vmatprep.subr.mxu0 0.0
        %551 = vmatpush1.xpose.msra.mxu0 0.0
        %552 = vmatprep.subr.mxu0 0.0
        %553 = vmatpush1.xpose.msra.mxu0 0.0
        %554 = vmatprep.subr.mxu0 0.0
        %555 = vmatpush1.xpose.msra.mxu0 0.0
        %556 = vmatprep.subr.mxu0 0.0
        %557 = vmatpush1.xpose.msra.mxu0 0.0
        %558 = vmatprep.subr.mxu0 0.0
        %559 = vmatpush1.xpose.msra.mxu0 0.0
        %560 = vmatprep.subr.mxu0 0.0
        %561 = vmatpush1.xpose.msra.mxu0 0.0
        %562 = vmatprep.subr.mxu0 0.0
        %563 = vmatpush1.xpose.msra.mxu0 0.0
        %564 = vmatprep.subr.mxu0 0.0
        %565 = vmatpush1.xpose.msra.mxu0 0.0
        %566 = vmatprep.subr.mxu0 0.0
        %567 = vmatpush1.xpose.msra.mxu0 0.0
        %568 = vmatprep.subr.mxu0 0.0
        %569 = vmatpush1.xpose.msra.mxu0 0.0
        %570 = vmatprep.subr.mxu0 0.0
        %571 = vmatpush1.xpose.msra.mxu0 0.0
        %572 = vmatprep.subr.mxu0 0.0
        %573 = vmatpush1.xpose.msra.mxu0 0.0
        %574 = vmatprep.subr.mxu0 0.0
        %575 = vmatpush1.xpose.msra.mxu0 0.0
        %576 = vmatprep.subr.mxu0 0.0
        %577 = vmatpush1.xpose.msra.mxu0 0.0
        %578 = vmatprep.subr.mxu0 0.0
        %579 = vmatpush1.xpose.msra.mxu0 0.0
        %580 = vmatprep.subr.mxu0 0.0
        %581 = vmatpush1.xpose.msra.mxu0 0.0
        %582 = vmatprep.subr.mxu0 0.0
        %583 = vmatpush1.xpose.msra.mxu0 0.0
        %584 = vmatprep.subr.mxu0 0.0
        %585 = vmatpush1.xpose.msra.mxu0 0.0
        %586 = vmatprep.subr.mxu0 0.0
        %587 = vmatpush1.xpose.msra.mxu0 0.0
        %588 = vmatprep.subr.mxu0 0.0
        %589 = vmatpush1.xpose.msra.mxu0 0.0
        %590 = vmatprep.subr.mxu0 0.0
        %591 = vmatpush1.xpose.msra.mxu0 0.0
        %592 = vmatprep.subr.mxu0 0.0
        %593 = vmatpush1.xpose.msra.mxu0 0.0
        %594 = vmatprep.subr.mxu0 0.0
        %595 = vmatpush1.xpose.msra.mxu0 0.0
        %596 = vmatprep.subr.mxu0 0.0
        %597 = vmatpush1.xpose.msra.mxu0 0.0
        %598 = vmatprep.subr.mxu0 0.0
        %599 = vmatpush1.xpose.msra.mxu0 0.0
        %600 = vmatprep.subr.mxu0 0.0
        %601 = vmatpush1.xpose.msra.mxu0 0.0
        %602 = vmatprep.subr.mxu0 0.0
        %603 = vmatpush1.xpose.msra.mxu0 0.0
        %604 = vmatprep.subr.mxu0 0.0
        %605 = vmatpush1.xpose.msra.mxu0 0.0
        %606 = vmatprep.subr.mxu0 0.0
        %607 = vmatpush1.xpose.msra.mxu0 0.0
        %608 = vmatprep.subr.mxu0 0.0
        %609 = vmatpush1.xpose.msra.mxu0 0.0
        %610 = vmatprep.mubr.f32.mxu0 0.0
        %v611 = vand.u32 %v276, 4294901760
        %v612 = vsub.f32 %v276, %v611
        %v613 = vand.u32 %v612, 4294901760
        %614 = vmatmul.mubr.f32.gmra.mrb[0].mxu0 %v613
        %v615 = vpop.f32.mrb[0].mxu0
        %v616 = vadd.f32 %v534, %v615
        %v617 = vpop.f32.mrb[0].mxu0
        %618 = vmatprep.mubr.f32.mxu0 0.0
        %v619 = vand.u32 %v279, 4294901760
        %v620 = vsub.f32 %v279, %v619
        %v621 = vand.u32 %v620, 4294901760
        %622 = vmatmul.mubr.f32.gmra.mrb[0].mxu0 %v621
        %v623 = vpop.f32.mrb[0].mxu0
        %v624 = vadd.f32 %v541, %v623
        %v625 = vpop.f32.mrb[0].mxu0
        %626 = vdwg.mxu0
        %627 = vmatprep.subr.mxu0 0.0
        %v628 = vand.u32 %v282, 4294901760
        %v629 = vsub.f32 %v282, %v628
        %v630 = vand.u32 %v629, 4294901760
        %631 = vmatpush1.xpose.msra.mxu0 %v630
        %632 = vmatprep.subr.mxu0 0.0
        %v633 = vand.u32 %v285, 4294901760
        %v634 = vsub.f32 %v285, %v633
        %v635 = vand.u32 %v634, 4294901760
        %636 = vmatpush1.xpose.msra.mxu0 %v635
        %637 = vmatprep.subr.mxu0 0.0
        %638 = vmatpush1.xpose.msra.mxu0 0.0
        %639 = vmatprep.subr.mxu0 0.0
        %640 = vmatpush1.xpose.msra.mxu0 0.0
        %641 = vmatprep.subr.mxu0 0.0
        %642 = vmatpush1.xpose.msra.mxu0 0.0
        %643 = vmatprep.subr.mxu0 0.0
        %644 = vmatpush1.xpose.msra.mxu0 0.0
        %645 = vmatprep.subr.mxu0 0.0
        %646 = vmatpush1.xpose.msra.mxu0 0.0
        %647 = vmatprep.subr.mxu0 0.0
        %648 = vmatpush1.xpose.msra.mxu0 0.0
        %649 = vmatprep.subr.mxu0 0.0
        %650 = vmatpush1.xpose.msra.mxu0 0.0
        %651 = vmatprep.subr.mxu0 0.0
        %652 = vmatpush1.xpose.msra.mxu0 0.0
        %653 = vmatprep.subr.mxu0 0.0
        %654 = vmatpush1.xpose.msra.mxu0 0.0
        %655 = vmatprep.subr.mxu0 0.0
        %656 = vmatpush1.xpose.msra.mxu0 0.0
        %657 = vmatprep.subr.mxu0 0.0
        %658 = vmatpush1.xpose.msra.mxu0 0.0
        %659 = vmatprep.subr.mxu0 0.0
        %660 = vmatpush1.xpose.msra.mxu0 0.0
        %661 = vmatprep.subr.mxu0 0.0
        %662 = vmatpush1.xpose.msra.mxu0 0.0
        %663 = vmatprep.subr.mxu0 0.0
        %664 = vmatpush1.xpose.msra.mxu0 0.0
        %665 = vmatprep.subr.mxu0 0.0
        %666 = vmatpush1.xpose.msra.mxu0 0.0
        %667 = vmatprep.subr.mxu0 0.0
        %668 = vmatpush1.xpose.msra.mxu0 0.0
        %669 = vmatprep.subr.mxu0 0.0
        %670 = vmatpush1.xpose.msra.mxu0 0.0
        %671 = vmatprep.subr.mxu0 0.0
        %672 = vmatpush1.xpose.msra.mxu0 0.0
        %673 = vmatprep.subr.mxu0 0.0
        %674 = vmatpush1.xpose.msra.mxu0 0.0
        %675 = vmatprep.subr.mxu0 0.0
        %676 = vmatpush1.xpose.msra.mxu0 0.0
        %677 = vmatprep.subr.mxu0 0.0
        %678 = vmatpush1.xpose.msra.mxu0 0.0
        %679 = vmatprep.subr.mxu0 0.0
        %680 = vmatpush1.xpose.msra.mxu0 0.0
        %681 = vmatprep.subr.mxu0 0.0
        %682 = vmatpush1.xpose.msra.mxu0 0.0
        %683 = vmatprep.subr.mxu0 0.0
        %684 = vmatpush1.xpose.msra.mxu0 0.0
        %685 = vmatprep.subr.mxu0 0.0
        %686 = vmatpush1.xpose.msra.mxu0 0.0
        %687 = vmatprep.subr.mxu0 0.0
        %688 = vmatpush1.xpose.msra.mxu0 0.0
        %689 = vmatprep.subr.mxu0 0.0
        %690 = vmatpush1.xpose.msra.mxu0 0.0
        %691 = vmatprep.subr.mxu0 0.0
        %692 = vmatpush1.xpose.msra.mxu0 0.0
        %693 = vmatprep.subr.mxu0 0.0
        %694 = vmatpush1.xpose.msra.mxu0 0.0
        %695 = vmatprep.subr.mxu0 0.0
        %696 = vmatpush1.xpose.msra.mxu0 0.0
        %697 = vmatprep.mubr.f32.mxu0 0.0
        %v698 = vand.u32 %v276, 4294901760
        %699 = vmatmul.mubr.f32.gmra.mrb[0].mxu0 %v698
        %v700 = vpop.f32.mrb[0].mxu0
        %v701 = vadd.f32 %v616, %v700
        %v702 = vpop.f32.mrb[0].mxu0
        %703 = vmatprep.mubr.f32.mxu0 0.0
        %v704 = vand.u32 %v279, 4294901760
        %705 = vmatmul.mubr.f32.gmra.mrb[0].mxu0 %v704
        %v706 = vpop.f32.mrb[0].mxu0
        %v707 = vadd.f32 %v624, %v706
        %v708 = vpop.f32.mrb[0].mxu0
        %709 = vdwg.mxu0
        %710 = vmatprep.subr.mxu0 0.0
        %v711 = vand.u32 %v282, 4294901760
        %712 = vmatpush1.xpose.msra.mxu0 %v711
        %713 = vmatprep.subr.mxu0 0.0
        %v714 = vand.u32 %v285, 4294901760
        %715 = vmatpush1.xpose.msra.mxu0 %v714
        %716 = vmatprep.subr.mxu0 0.0
        %717 = vmatpush1.xpose.msra.mxu0 0.0
        %718 = vmatprep.subr.mxu0 0.0
        %719 = vmatpush1.xpose.msra.mxu0 0.0
        %720 = vmatprep.subr.mxu0 0.0
        %721 = vmatpush1.xpose.msra.mxu0 0.0
        %722 = vmatprep.subr.mxu0 0.0
        %723 = vmatpush1.xpose.msra.mxu0 0.0
        %724 = vmatprep.subr.mxu0 0.0
        %725 = vmatpush1.xpose.msra.mxu0 0.0
        %726 = vmatprep.subr.mxu0 0.0
        %727 = vmatpush1.xpose.msra.mxu0 0.0
        %728 = vmatprep.subr.mxu0 0.0
        %729 = vmatpush1.xpose.msra.mxu0 0.0
        %730 = vmatprep.subr.mxu0 0.0
        %731 = vmatpush1.xpose.msra.mxu0 0.0
        %732 = vmatprep.subr.mxu0 0.0
        %733 = vmatpush1.xpose.msra.mxu0 0.0
        %734 = vmatprep.subr.mxu0 0.0
        %735 = vmatpush1.xpose.msra.mxu0 0.0
        %736 = vmatprep.subr.mxu0 0.0
        %737 = vmatpush1.xpose.msra.mxu0 0.0
        %738 = vmatprep.subr.mxu0 0.0
        %739 = vmatpush1.xpose.msra.mxu0 0.0
        %740 = vmatprep.subr.mxu0 0.0
        %741 = vmatpush1.xpose.msra.mxu0 0.0
        %742 = vmatprep.subr.mxu0 0.0
        %743 = vmatpush1.xpose.msra.mxu0 0.0
        %744 = vmatprep.subr.mxu0 0.0
        %745 = vmatpush1.xpose.msra.mxu0 0.0
        %746 = vmatprep.subr.mxu0 0.0
        %747 = vmatpush1.xpose.msra.mxu0 0.0
        %748 = vmatprep.subr.mxu0 0.0
        %749 = vmatpush1.xpose.msra.mxu0 0.0
        %750 = vmatprep.subr.mxu0 0.0
        %751 = vmatpush1.xpose.msra.mxu0 0.0
        %752 = vmatprep.subr.mxu0 0.0
        %753 = vmatpush1.xpose.msra.mxu0 0.0
        %754 = vmatprep.subr.mxu0 0.0
        %755 = vmatpush1.xpose.msra.mxu0 0.0
        %756 = vmatprep.subr.mxu0 0.0
        %757 = vmatpush1.xpose.msra.mxu0 0.0
        %758 = vmatprep.subr.mxu0 0.0
        %759 = vmatpush1.xpose.msra.mxu0 0.0
        %760 = vmatprep.subr.mxu0 0.0
        %761 = vmatpush1.xpose.msra.mxu0 0.0
        %762 = vmatprep.subr.mxu0 0.0
        %763 = vmatpush1.xpose.msra.mxu0 0.0
        %764 = vmatprep.subr.mxu0 0.0
        %765 = vmatpush1.xpose.msra.mxu0 0.0
        %766 = vmatprep.subr.mxu0 0.0
        %767 = vmatpush1.xpose.msra.mxu0 0.0
        %768 = vmatprep.subr.mxu0 0.0
        %769 = vmatpush1.xpose.msra.mxu0 0.0
        %770 = vmatprep.subr.mxu0 0.0
        %771 = vmatpush1.xpose.msra.mxu0 0.0
        %772 = vmatprep.subr.mxu0 0.0
        %773 = vmatpush1.xpose.msra.mxu0 0.0
        %774 = vmatprep.subr.mxu0 0.0
        %775 = vmatpush1.xpose.msra.mxu0 0.0
        %776 = vmatprep.mubr.f32.mxu0 0.0
        %v777 = vand.u32 %v276, 4294901760
        %778 = vmatmul.mubr.f32.gmra.mrb[0].mxu0 %v777
        %v779 = vpop.f32.mrb[0].mxu0
        %v780 = vadd.f32 %v701, %v779
        %v781 = vpop.f32.mrb[0].mxu0
        %782 = vmatprep.mubr.f32.mxu0 0.0
        %v783 = vand.u32 %v279, 4294901760
        %784 = vmatmul.mubr.f32.gmra.mrb[0].mxu0 %v783
        %v785 = vpop.f32.mrb[0].mxu0
        %v786 = vadd.f32 %v707, %v785
        %v787 = vpop.f32.mrb[0].mxu0
        %788 = vdwg.mxu0
        %v789 = vmul.f32 %v270, %v270
        %v790 = vmul.f32 %v271, %v271
        %v791 = vsel %vm274, %v789, 0.0
        %792 = vadd.xlane.f32.xlu0 %v791
        %v793 = vpop.xlane.xlu0 %792
        %v794 = vsel %vm274, %v790, 0.0
        %795 = vadd.xlane.f32.xlu0 %v794
        %v796 = vpop.xlane.xlu0 %795
        %v797 = vmul.f32 %v780, -2.0
        %v798 = vmul.f32 %v786, -2.0
        %v799 = vadd.f32 %v797, %v793
        %v800 = vadd.f32 %v798, %v796
        %v801 = vld [vmem:[%s268] sm:$0x1]
        %v803 = vlaneseq
        %v804 = vshrl.u32 %v803, 7
        %v805 = vsub.s32 0, %v804
        %v806 = vrot.slane %v801, %v805
        %v808 = vadd.f32 %v799, %v806
        %v809 = vadd.f32 %v800, %v806
        %vm810 = vcmask 130048
        %811 = vst.msk [vmem:[%s242] sm:$0xff] %vm810, %v808
        %812 = vst.msk [vmem:[%s242 + $0x8] sm:$0xff] %vm810, %v809
        %s813 = sand.u32 %s132, 1
        %s814 = scalar_lea.sflag [#allocation3], %s813
        %s815 = sand.u32 %s132, 1
        %s816 = smul.addr %s815, 16
        %s817 = scalar_lea.vmem [#allocation2], %s816
        // Predicated region
        $region33: #{tpu_custom_call.1} parent=31 // pred_check
          %p818 = pneg %p142
        $region34: #{tpu_custom_call.1} parent=31 // pred_check_branch
          %820 = sbr.rel (%p818) target = $region36
        $region35: #{tpu_custom_call.1} parent=31 // pred_region
          %s821 = smul.u32 2, %s23
          %s823 = ssub.s32 256, 256
          %824 = vsyncadd %s814, %s823
          %s825 = sadd.s32 %s24, %s821
          %s826 = smul.addr %s22, 2
          %s827 = sadd.s32 %s825, %s826
          %s828 = smul.addr %s827, 128
          %s829 = scalar_lea.hbm %s3, %s828
          %s830 = sshll.u32 %s817, 4
          %s831 = int_to_ptr.vmem [resolvable:$true] %s830
          %836 = dma.vmem_to_hbm [thread:$0]  %s831, 256, %s829, %s814, 128, 128, 8
        $region36: #{tpu_custom_call.1} parent=31 // pred_fallthru
          _
      $region32: #{tpu_custom_call.1} parent=5 // pred_fallthru
        _
      %p837 = scmp.le.s32.totalorder 2, %s12
      // Predicated region
      $region37: #{tpu_custom_call.1} parent=5 // pred_check
        %p838 = pneg %p837
      $region38: #{tpu_custom_call.1} parent=5 // pred_check_branch
        %840 = sbr.rel (%p838) target = $region40
      $region39: #{tpu_custom_call.1} parent=5 // pred_region
        %s841 = ssub.s32 %s12, 2
        // Predicated region
        $region41: #{tpu_custom_call.1} parent=39 // pred_check
          %p842 = pneg %p148
        $region42: #{tpu_custom_call.1} parent=39 // pred_check_branch
          %844 = sbr.rel (%p842) target = $region44
        $region43: #{tpu_custom_call.1} parent=39 // pred_region
          %s845 = sand.u32 %s133, 1
          %s846 = scalar_lea.sflag [#allocation3], %s845
          %s847 = sand.u32 %s133, 1
          %s848 = smul.addr %s847, 16
          %s849 = scalar_lea.vmem [#allocation2], %s848
          %850 = dma.done %s846, 256
        $region44: #{tpu_custom_call.1} parent=39 // pred_fallthru
          _
      $region40: #{tpu_custom_call.1} parent=5 // pred_fallthru
        _
    $region6: #{tpu_custom_call.1} parent=1 // loop_footer
      %s16 = sadd.s32 1, %s12
    $region7: #{tpu_custom_call.1} parent=1 // loop_footer_branch
      %11 = sbr.rel target = $region3
    $region8: #{tpu_custom_call.1} parent=1 // loop_exit
      _
    %851 = vsyncpa [#allocation3], 1
    %s852 = scalar_lea.sflag [#allocation3], 1
    %853 = vsyncpa %s852, 1

</llo_original>
